<compile_context>
chip_gen: v7x
topology: tpu7x:2x2x1
jax: 0.10.0
libtpu: 0.0.40
codegen_flags: <defaults>
</compile_context>

<pallas_src>
import jax
import jax.numpy as jnp
from jax.experimental import pallas as pl
from jax.experimental.pallas import tpu as pltpu

_LANES = 128


def _round_up(a: int, m: int) -> int:
    return (a + m - 1) // m * m


def _linreg_kernel(x_ref, w_ref, b_ref, o_ref):
    # x_ref: VMEM (rows, F*128)  -- 128 samples per row, features interleaved on lanes
    # w_ref: VMEM (F*128, 128)   -- block-diagonal expanded weights (resident)
    # b_ref: SMEM (1,)           -- bias scalar
    # o_ref: VMEM (rows, 128)    -- lane- and sublane-dense output block
    o_ref[...] = (
        jnp.dot(x_ref[...], w_ref[...], preferred_element_type=jnp.float32)
        + b_ref[0]
    )


def gd_linear_regression_forward(
    x: jax.Array,
    w: jax.Array,
    b: jax.Array,
    *,
    rows_per_tile: int = 2048,  # 2048 rows x 128 lanes = 256K samples per grid step
) -> jax.Array:
    """Pallas equivalent of GDLinearRegression.forward: y = x @ w + b.

    x: (N, F) float32, w: (F,) float32, b: (1,) float32 -> y: (N,) float32
    """
    x = jnp.asarray(x, jnp.float32)
    n, f = x.shape
    w1 = jnp.asarray(w, jnp.float32).reshape(f)
    b1 = jnp.asarray(b, jnp.float32).reshape(1)

    if n == 0:
        return jnp.zeros((0,), jnp.float32)

    # Pad the batch only up to a multiple of 128 (never to a tile multiple).
    # Zero rows produce y = b and are sliced off below.  When N is already
    # 128-aligned this branch is skipped and x is never copied: the reshape
    # below is a free row-major relabel, not a transpose.
    n_pad = _round_up(n, _LANES)
    if n_pad != n:
        x = jnp.pad(x, ((0, n_pad - n), (0, 0)))
    n_rows = n_pad // _LANES
    x_rows = x.reshape(n_rows, f * _LANES)

    # Block-diagonal weight expansion: W[F*j + f, j] = w[f].
    # Tiny (F*128*128 f32 = 384 KiB for F=6) and resident across grid steps.
    w_mat = jnp.kron(jnp.eye(_LANES, dtype=jnp.float32), w1.reshape(f, 1))

    # Tile the batch-row axis.  Keep blocks a multiple of 8 sublanes and force
    # >=2 grid steps when possible so both v7x TensorCores get work.
    if n_rows < 16:
        rt = n_rows
    else:
        rt = max(8, min(rows_per_tile, _round_up(pl.cdiv(n_rows, 2), 8)))
        rt = _round_up(rt, 8)
    grid = pl.cdiv(n_rows, rt)

    x_bytes = n_pad * f * 4
    out = pl.pallas_call(
        _linreg_kernel,
        out_shape=jax.ShapeDtypeStruct((n_rows, _LANES), jnp.float32),
        grid=(grid,),
        in_specs=[
            pl.BlockSpec((rt, f * _LANES), lambda i: (i, 0)),       # x tile
            pl.BlockSpec((f * _LANES, _LANES), lambda i: (0, 0)),   # W (resident)
            pl.BlockSpec(memory_space=pltpu.MemorySpace.SMEM),      # b scalar
        ],
        out_specs=pl.BlockSpec((rt, _LANES), lambda i: (i, 0)),
        compiler_params=pltpu.CompilerParams(
            dimension_semantics=("parallel",),      # shard batch axis across TCs (v7x)
            vmem_limit_bytes=48 * 1024 * 1024,      # <=48 MiB: safe on v7x (64 MiB/TC)
        ),
        cost_estimate=pl.CostEstimate(
            flops=2 * n_pad * f,
            transcendentals=0,
            bytes_accessed=x_bytes + f * _LANES * _LANES * 4 + n_pad * 4,
        ),
    )(x_rows, w_mat, b1)

    # TODO(synk): fuse the full GD step (residual, grad_w = x^T r, grad_b = sum r,
    # parameter update) into one pallas_call so x is read from HBM only once.
    # TODO(synk): optionally stream x as bfloat16 (f32 accumulate) for ~1.8x HBM
    # savings once the accuracy impact is validated.
    return out.reshape(-1)[:n]


if __name__ == "__main__":
    key = jax.random.PRNGKey(0)
    kx1, kx2, kw, kb = jax.random.split(key, 4)

    F = 6  # module uses 6 features: nn.Parameter(torch.randn(6))
    w = jax.random.normal(kw, (F,), dtype=jnp.float32)   # ~ torch.randn(6)
    b = jax.random.normal(kb, (1,), dtype=jnp.float32)   # ~ torch.randn(1)

    # Case 1: small 128-aligned batch (zero-copy path, single block).
    N1 = 384
    x1 = jax.random.normal(kx1, (N1, F), dtype=jnp.float32)
    y1 = jax.block_until_ready(gd_linear_regression_forward(x1, w, b))
    assert y1.shape == (N1,)
    assert jnp.allclose(y1, x1 @ w + b, atol=1e-3, rtol=1e-3)

    # Case 2: unaligned batch -> exercises the 128-pad branch, a multi-step
    # grid, and a partially out-of-bounds last block.
    N2 = 4500
    x2 = jax.random.normal(kx2, (N2, F), dtype=jnp.float32)
    y2 = jax.block_until_ready(gd_linear_regression_forward(x2, w, b))
    assert y2.shape == (N2,)
    assert jnp.allclose(y2, x2 @ w + b, atol=1e-3, rtol=1e-3)

    print("KERNEL_OK")
</pallas_src>

<mosaic_0001>
module attributes {stable_mosaic.version = 11 : i64} {
  func.func @_linreg_kernel(%arg0: i32, %arg1: memref<3x768xf32, #tpu.memory_space<vmem>>, %arg2: memref<768x128xf32, #tpu.memory_space<vmem>>, %arg3: memref<1xf32, #tpu.memory_space<smem>>, %arg4: memref<3x128xf32, #tpu.memory_space<vmem>>) attributes {dimension_semantics = [#tpu.dimension_semantics<parallel>], iteration_bounds = array<i64: 1>, scalar_prefetch = 0 : i64, scratch_operands = 0 : i64, tpu.core_type = #tpu.core_type<tc>, window_params = [{transform_indices = @transform_0, window_bounds = array<i64: 3, 768>}, {pipeline_mode = #tpu.pipeline_mode<synchronous>, transform_indices = @transform_1, window_bounds = array<i64: 768, 128>}, {transform_indices = @transform_2, window_bounds = array<i64: 1>}, {transform_indices = @transform_3, window_bounds = array<i64: 3, 128>}]} {
    %c0 = arith.constant 0 : index
    %c0_0 = arith.constant 0 : index
    %0 = vector.load %arg1[%c0, %c0_0] : memref<3x768xf32, #tpu.memory_space<vmem>>, vector<3x768xf32>
    %c0_1 = arith.constant 0 : index
    %c0_2 = arith.constant 0 : index
    %1 = vector.load %arg2[%c0_1, %c0_2] : memref<768x128xf32, #tpu.memory_space<vmem>>, vector<768x128xf32>
    %cst = arith.constant dense<0.000000e+00> : vector<3x128xf32>
    %2 = tpu.matmul %0, %1, %cst {dimension_numbers = #tpu.dot_dimension_numbers<[1], [0], [0], [1], [0, 0, 1, 1], [], []>} : vector<3x768xf32>, vector<768x128xf32>, vector<3x128xf32> -> vector<3x128xf32>
    %c0_3 = arith.constant 0 : index
    %3 = memref.load %arg3[%c0_3] : memref<1xf32, #tpu.memory_space<smem>>
    %4 = vector.broadcast %3 : f32 to vector<3x128xf32>
    %5 = arith.addf %2, %4 : vector<3x128xf32>
    %c0_4 = arith.constant 0 : index
    %c0_5 = arith.constant 0 : index
    %6 = vector.load %arg4[%c0_4, %c0_5] : memref<3x128xf32, #tpu.memory_space<vmem>>, vector<3x128xf32>
    tpu.vector_store %arg4[%c0_4, %c0_5], %5 {strides = array<i32>} : memref<3x128xf32, #tpu.memory_space<vmem>>, vector<3x128xf32>,
    return
  }
  func.func @transform_0(%arg0: i32) -> (i32, i32) {
    %c0_i32 = arith.constant 0 : i32
    %c0_i32_0 = arith.constant 0 : i32
    return %arg0, %c0_i32 : i32, i32
  }
  func.func @transform_1(%arg0: i32) -> (i32, i32) {
    %c0_i32 = arith.constant 0 : i32
    %c0_i32_0 = arith.constant 0 : i32
    %c0_i32_1 = arith.constant 0 : i32
    return %c0_i32, %c0_i32_0 : i32, i32
  }
  func.func @transform_2(%arg0: i32) -> i32 {
    %c0_i32 = arith.constant 0 : i32
    %c0_i32_0 = arith.constant 0 : i32
    return %c0_i32 : i32
  }
  func.func @transform_3(%arg0: i32) -> (i32, i32) {
    %c0_i32 = arith.constant 0 : i32
    %c0_i32_0 = arith.constant 0 : i32
    return %arg0, %c0_i32 : i32, i32
  }
}

</mosaic_0001>

<llo_original>
// kernel: tpu_custom_call.1
$region0: #{tpu_custom_call.1}
  #allocation0 [shape = 'u32[]', space=smem, size = 0x4, offset = 0x4, fixed_abs, tag = 'smem constant byte address 0x4 - core index']
  #allocation1 [shape = 'u32[144,128]{1,0:T(1,128)}', space=vmem, size = 0x12000, scoped, tag = 'internal scratch']
  #allocation2 [shape = 'f32[1]{0:T(128)S(6)}', space=smem, size = 0x200, scoped, tag = 'scoped memory for tpu_custom_call.1']
  %s0 = inlined_call_operand.hbm [shape: f32[3,768], index: 0, kind: input, shape index: {}]
  %s1 = inlined_call_operand.hbm [shape: f32[768,128], index: 1, kind: input, shape index: {}]
  %s2 = inlined_call_operand.<no memory space> [shape: f32[1], index: 2, kind: input, shape index: {}]
  %s3 = inlined_call_operand.hbm [shape: f32[3,128], index: 3, kind: output, shape index: {}]
  %s4 = sld [smem:[#allocation0]]
  $region30: #{tpu_custom_call.1} parent=0
    _
  %s6 = ssub.s32 1, %s4
  %s7 = scalar_select 0, %s6, %s4
  %8 = sst [smem:[#allocation2]] %s2
  $region1: #{tpu_custom_call.1} parent=0
    #allocation3 [shape = 'u8[12288]{0}', space=vmem, size = 0x3000, scoped, tag = 'input window, operand 0, single buffered']
    #allocation4 [shape = 's32[1]{0}', space=sflag, size = 0x4, scoped, tag = 'scoped memory for tpu_custom_call.1']
    #allocation5 [shape = 's32[1]{0}', space=sflag, size = 0x4, scoped, tag = 'scoped memory for tpu_custom_call.1']
    #allocation6 [shape = 'u8[393216]{0}', space=vmem, size = 0x60000, scoped, tag = 'input window, operand 1, single buffered']
    #allocation7 [shape = 's32[1]{0}', space=sflag, size = 0x4, scoped, tag = 'scoped memory for tpu_custom_call.1']
    #allocation8 [shape = 'u8[2048]{0}', space=vmem, size = 0x800, scoped, tag = 'output window, operand 0, single buffered']
    %9 = vsyncpa [#allocation4], 0
    %10 = vsyncpa [#allocation7], 0
    %11 = vsyncpa [#allocation5], 0
    // Predicated region
    $region2: #{tpu_custom_call.1} parent=1 // pred_check
      _
    $region3: #{tpu_custom_call.1} parent=1 // pred_check_branch
      %13 = sbr.rel (0) target = $region5
    $region4: #{tpu_custom_call.1} parent=1 // pred_region
      %s15 = ssub.s32 384, 384
      %16 = vsyncadd [#allocation4], %s15
      %s18 = sshll.u32 [#allocation3], 4
      %s19 = int_to_ptr.vmem [resolvable:$true] %s18
      %21 = dma.hbm_to_vmem [thread:$0]  %s0, 384, %s19, [#allocation4]
    $region5: #{tpu_custom_call.1} parent=1 // pred_fallthru
      _
    // Predicated region
    $region6: #{tpu_custom_call.1} parent=1 // pred_check
      _
    $region7: #{tpu_custom_call.1} parent=1 // pred_check_branch
      %23 = sbr.rel (0) target = $region9
    $region8: #{tpu_custom_call.1} parent=1 // pred_region
      %s25 = ssub.s32 12288, 12288
      %26 = vsyncadd [#allocation7], %s25
      %s27 = sshll.u32 [#allocation6], 4
      %s28 = int_to_ptr.vmem [resolvable:$true] %s27
      %33 = dma.hbm_to_vmem [thread:$0]  %s1, 12288, %s28, [#allocation7], 128, 128, 8
    $region9: #{tpu_custom_call.1} parent=1 // pred_fallthru
      _
    // Predicated region
    $region10: #{tpu_custom_call.1} parent=1 // pred_check
      _
    $region11: #{tpu_custom_call.1} parent=1 // pred_check_branch
      %35 = sbr.rel (0) target = $region13
    $region12: #{tpu_custom_call.1} parent=1 // pred_region
      _
    $region13: #{tpu_custom_call.1} parent=1 // pred_fallthru
      _
    // Predicated region
    $region14: #{tpu_custom_call.1} parent=1 // pred_check
      _
    $region15: #{tpu_custom_call.1} parent=1 // pred_check_branch
      %37 = sbr.rel (0) target = $region17
    $region16: #{tpu_custom_call.1} parent=1 // pred_region
      %38 = dma.done [#allocation4], 384
    $region17: #{tpu_custom_call.1} parent=1 // pred_fallthru
      _
    // Predicated region
    $region18: #{tpu_custom_call.1} parent=1 // pred_check
      _
    $region19: #{tpu_custom_call.1} parent=1 // pred_check_branch
      %40 = sbr.rel (0) target = $region21
    $region20: #{tpu_custom_call.1} parent=1 // pred_region
      %41 = dma.done [#allocation7], 12288
    $region21: #{tpu_custom_call.1} parent=1 // pred_fallthru
      _
    %v42 = vld [vmem:[#allocation3] sm:$0x77]
    %v43 = vld [vmem:[#allocation3 + $0x8] sm:$0x77]
    %v44 = vld [vmem:[#allocation3 + $0x10] sm:$0x77]
    %v45 = vld [vmem:[#allocation6] sm:$0xff]
    %v46 = vld [vmem:[#allocation6 + $0x8] sm:$0xff]
    %v47 = vld [vmem:[#allocation6 + $0x10] sm:$0xff]
    %v48 = vld [vmem:[#allocation6 + $0x18] sm:$0xff]
    %v49 = vld [vmem:[#allocation6 + $0x20] sm:$0xff]
    %v50 = vld [vmem:[#allocation6 + $0x28] sm:$0xff]
    %v51 = vld [vmem:[#allocation6 + $0x30] sm:$0xff]
    %v52 = vld [vmem:[#allocation6 + $0x38] sm:$0xff]
    %v53 = vld [vmem:[#allocation6 + $0x40] sm:$0xff]
    %v54 = vld [vmem:[#allocation6 + $0x48] sm:$0xff]
    %v55 = vld [vmem:[#allocation6 + $0x50] sm:$0xff]
    %v56 = vld [vmem:[#allocation6 + $0x58] sm:$0xff]
    %v57 = vld [vmem:[#allocation6 + $0x60] sm:$0xff]
    %v58 = vld [vmem:[#allocation6 + $0x68] sm:$0xff]
    %v59 = vld [vmem:[#allocation6 + $0x70] sm:$0xff]
    %v60 = vld [vmem:[#allocation6 + $0x78] sm:$0xff]
    %v61 = vld [vmem:[#allocation6 + $0x80] sm:$0xff]
    %v62 = vld [vmem:[#allocation6 + $0x88] sm:$0xff]
    %v63 = vld [vmem:[#allocation6 + $0x90] sm:$0xff]
    %v64 = vld [vmem:[#allocation6 + $0x98] sm:$0xff]
    %v65 = vld [vmem:[#allocation6 + $0xa0] sm:$0xff]
    %v66 = vld [vmem:[#allocation6 + $0xa8] sm:$0xff]
    %v67 = vld [vmem:[#allocation6 + $0xb0] sm:$0xff]
    %v68 = vld [vmem:[#allocation6 + $0xb8] sm:$0xff]
    %v69 = vld [vmem:[#allocation6 + $0xc0] sm:$0xff]
    %v70 = vld [vmem:[#allocation6 + $0xc8] sm:$0xff]
    %v71 = vld [vmem:[#allocation6 + $0xd0] sm:$0xff]
    %v72 = vld [vmem:[#allocation6 + $0xd8] sm:$0xff]
    %v73 = vld [vmem:[#allocation6 + $0xe0] sm:$0xff]
    %v74 = vld [vmem:[#allocation6 + $0xe8] sm:$0xff]
    %v75 = vld [vmem:[#allocation6 + $0xf0] sm:$0xff]
    %v76 = vld [vmem:[#allocation6 + $0xf8] sm:$0xff]
    %v77 = vld [vmem:[#allocation6 + $0x100] sm:$0xff]
    %v78 = vld [vmem:[#allocation6 + $0x108] sm:$0xff]
    %v79 = vld [vmem:[#allocation6 + $0x110] sm:$0xff]
    %v80 = vld [vmem:[#allocation6 + $0x118] sm:$0xff]
    %v81 = vld [vmem:[#allocation6 + $0x120] sm:$0xff]
    %v82 = vld [vmem:[#allocation6 + $0x128] sm:$0xff]
    %v83 = vld [vmem:[#allocation6 + $0x130] sm:$0xff]
    %v84 = vld [vmem:[#allocation6 + $0x138] sm:$0xff]
    %v85 = vld [vmem:[#allocation6 + $0x140] sm:$0xff]
    %v86 = vld [vmem:[#allocation6 + $0x148] sm:$0xff]
    %v87 = vld [vmem:[#allocation6 + $0x150] sm:$0xff]
    %v88 = vld [vmem:[#allocation6 + $0x158] sm:$0xff]
    %v89 = vld [vmem:[#allocation6 + $0x160] sm:$0xff]
    %v90 = vld [vmem:[#allocation6 + $0x168] sm:$0xff]
    %v91 = vld [vmem:[#allocation6 + $0x170] sm:$0xff]
    %v92 = vld [vmem:[#allocation6 + $0x178] sm:$0xff]
    %v93 = vld [vmem:[#allocation6 + $0x180] sm:$0xff]
    %v94 = vld [vmem:[#allocation6 + $0x188] sm:$0xff]
    %v95 = vld [vmem:[#allocation6 + $0x190] sm:$0xff]
    %v96 = vld [vmem:[#allocation6 + $0x198] sm:$0xff]
    %v97 = vld [vmem:[#allocation6 + $0x1a0] sm:$0xff]
    %v98 = vld [vmem:[#allocation6 + $0x1a8] sm:$0xff]
    %v99 = vld [vmem:[#allocation6 + $0x1b0] sm:$0xff]
    %v100 = vld [vmem:[#allocation6 + $0x1b8] sm:$0xff]
    %v101 = vld [vmem:[#allocation6 + $0x1c0] sm:$0xff]
    %v102 = vld [vmem:[#allocation6 + $0x1c8] sm:$0xff]
    %v103 = vld [vmem:[#allocation6 + $0x1d0] sm:$0xff]
    %v104 = vld [vmem:[#allocation6 + $0x1d8] sm:$0xff]
    %v105 = vld [vmem:[#allocation6 + $0x1e0] sm:$0xff]
    %v106 = vld [vmem:[#allocation6 + $0x1e8] sm:$0xff]
    %v107 = vld [vmem:[#allocation6 + $0x1f0] sm:$0xff]
    %v108 = vld [vmem:[#allocation6 + $0x1f8] sm:$0xff]
    %v109 = vld [vmem:[#allocation6 + $0x200] sm:$0xff]
    %v110 = vld [vmem:[#allocation6 + $0x208] sm:$0xff]
    %v111 = vld [vmem:[#allocation6 + $0x210] sm:$0xff]
    %v112 = vld [vmem:[#allocation6 + $0x218] sm:$0xff]
    %v113 = vld [vmem:[#allocation6 + $0x220] sm:$0xff]
    %v114 = vld [vmem:[#allocation6 + $0x228] sm:$0xff]
    %v115 = vld [vmem:[#allocation6 + $0x230] sm:$0xff]
    %v116 = vld [vmem:[#allocation6 + $0x238] sm:$0xff]
    %v117 = vld [vmem:[#allocation6 + $0x240] sm:$0xff]
    %v118 = vld [vmem:[#allocation6 + $0x248] sm:$0xff]
    %v119 = vld [vmem:[#allocation6 + $0x250] sm:$0xff]
    %v120 = vld [vmem:[#allocation6 + $0x258] sm:$0xff]
    %v121 = vld [vmem:[#allocation6 + $0x260] sm:$0xff]
    %v122 = vld [vmem:[#allocation6 + $0x268] sm:$0xff]
    %v123 = vld [vmem:[#allocation6 + $0x270] sm:$0xff]
    %v124 = vld [vmem:[#allocation6 + $0x278] sm:$0xff]
    %v125 = vld [vmem:[#allocation6 + $0x280] sm:$0xff]
    %v126 = vld [vmem:[#allocation6 + $0x288] sm:$0xff]
    %v127 = vld [vmem:[#allocation6 + $0x290] sm:$0xff]
    %v128 = vld [vmem:[#allocation6 + $0x298] sm:$0xff]
    %v129 = vld [vmem:[#allocation6 + $0x2a0] sm:$0xff]
    %v130 = vld [vmem:[#allocation6 + $0x2a8] sm:$0xff]
    %v131 = vld [vmem:[#allocation6 + $0x2b0] sm:$0xff]
    %v132 = vld [vmem:[#allocation6 + $0x2b8] sm:$0xff]
    %v133 = vld [vmem:[#allocation6 + $0x2c0] sm:$0xff]
    %v134 = vld [vmem:[#allocation6 + $0x2c8] sm:$0xff]
    %v135 = vld [vmem:[#allocation6 + $0x2d0] sm:$0xff]
    %v136 = vld [vmem:[#allocation6 + $0x2d8] sm:$0xff]
    %v137 = vld [vmem:[#allocation6 + $0x2e0] sm:$0xff]
    %v138 = vld [vmem:[#allocation6 + $0x2e8] sm:$0xff]
    %v139 = vld [vmem:[#allocation6 + $0x2f0] sm:$0xff]
    %v140 = vld [vmem:[#allocation6 + $0x2f8] sm:$0xff]
    %s141 = sld [smem:[#allocation2]]
    %v142 = vstv %s141
    %v146 = vcombine.high %v42, %v42
    %v147 = vcombine.high %v43, %v43
    %v148 = vcombine.high %v44, %v44
    %152 = vmatprep.subr.mxu0 0.0
    %153 = vmatpush1.msra.mxu0 %v45
    %154 = vmatprep.subr.mxu0 0.0
    %155 = vmatpush1.msra.mxu0 %v46
    %156 = vmatprep.subr.mxu0 0.0
    %157 = vmatpush1.msra.mxu0 %v47
    %158 = vmatprep.subr.mxu0 0.0
    %159 = vmatpush1.msra.mxu0 %v48
    %160 = vmatprep.subr.mxu0 0.0
    %161 = vmatpush1.msra.mxu0 %v49
    %162 = vmatprep.subr.mxu0 0.0
    %163 = vmatpush1.msra.mxu0 %v50
    %164 = vmatprep.subr.mxu0 0.0
    %165 = vmatpush1.msra.mxu0 %v51
    %166 = vmatprep.subr.mxu0 0.0
    %167 = vmatpush1.msra.mxu0 %v52
    %168 = vmatprep.subr.mxu0 0.0
    %169 = vmatpush1.msra.mxu0 %v53
    %170 = vmatprep.subr.mxu0 0.0
    %171 = vmatpush1.msra.mxu0 %v54
    %172 = vmatprep.subr.mxu0 0.0
    %173 = vmatpush1.msra.mxu0 %v55
    %174 = vmatprep.subr.mxu0 0.0
    %175 = vmatpush1.msra.mxu0 %v56
    %176 = vmatprep.subr.mxu0 0.0
    %177 = vmatpush1.msra.mxu0 %v57
    %178 = vmatprep.subr.mxu0 0.0
    %179 = vmatpush1.msra.mxu0 %v58
    %180 = vmatprep.subr.mxu0 0.0
    %181 = vmatpush1.msra.mxu0 %v59
    %182 = vmatprep.subr.mxu0 0.0
    %183 = vmatpush1.msra.mxu0 %v60
    %184 = vmatprep.subr.mxu0 0.0
    %185 = vmatpush1.msra.mxu0 %v61
    %186 = vmatprep.subr.mxu0 0.0
    %187 = vmatpush1.msra.mxu0 %v62
    %188 = vmatprep.subr.mxu0 0.0
    %189 = vmatpush1.msra.mxu0 %v63
    %190 = vmatprep.subr.mxu0 0.0
    %191 = vmatpush1.msra.mxu0 %v64
    %192 = vmatprep.subr.mxu0 0.0
    %193 = vmatpush1.msra.mxu0 %v65
    %194 = vmatprep.subr.mxu0 0.0
    %195 = vmatpush1.msra.mxu0 %v66
    %196 = vmatprep.subr.mxu0 0.0
    %197 = vmatpush1.msra.mxu0 %v67
    %198 = vmatprep.subr.mxu0 0.0
    %199 = vmatpush1.msra.mxu0 %v68
    %200 = vmatprep.subr.mxu0 0.0
    %201 = vmatpush1.msra.mxu0 %v69
    %202 = vmatprep.subr.mxu0 0.0
    %203 = vmatpush1.msra.mxu0 %v70
    %204 = vmatprep.subr.mxu0 0.0
    %205 = vmatpush1.msra.mxu0 %v71
    %206 = vmatprep.subr.mxu0 0.0
    %207 = vmatpush1.msra.mxu0 %v72
    %208 = vmatprep.subr.mxu0 0.0
    %209 = vmatpush1.msra.mxu0 %v73
    %210 = vmatprep.subr.mxu0 0.0
    %211 = vmatpush1.msra.mxu0 %v74
    %212 = vmatprep.subr.mxu0 0.0
    %213 = vmatpush1.msra.mxu0 %v75
    %214 = vmatprep.subr.mxu0 0.0
    %215 = vmatpush1.msra.mxu0 %v76
    %216 = vmatprep.mubr.f32.mxu0 %v146
    %217 = vmatmul.mubr.f32.gmra.mrb[0].mxu0 %v42
    %v218 = vpop.f32.mrb[0].mxu0
    %v219 = vadd.f32 %v142, %v218
    %v220 = vpop.f32.mrb[0].mxu0
    %221 = vdwg.mxu0
    %222 = vmatprep.subr.mxu0 0.0
    %223 = vmatpush1.msra.mxu0 %v77
    %224 = vmatprep.subr.mxu0 0.0
    %225 = vmatpush1.msra.mxu0 %v78
    %226 = vmatprep.subr.mxu0 0.0
    %227 = vmatpush1.msra.mxu0 %v79
    %228 = vmatprep.subr.mxu0 0.0
    %229 = vmatpush1.msra.mxu0 %v80
    %230 = vmatprep.subr.mxu0 0.0
    %231 = vmatpush1.msra.mxu0 %v81
    %232 = vmatprep.subr.mxu0 0.0
    %233 = vmatpush1.msra.mxu0 %v82
    %234 = vmatprep.subr.mxu0 0.0
    %235 = vmatpush1.msra.mxu0 %v83
    %236 = vmatprep.subr.mxu0 0.0
    %237 = vmatpush1.msra.mxu0 %v84
    %238 = vmatprep.subr.mxu0 0.0
    %239 = vmatpush1.msra.mxu0 %v85
    %240 = vmatprep.subr.mxu0 0.0
    %241 = vmatpush1.msra.mxu0 %v86
    %242 = vmatprep.subr.mxu0 0.0
    %243 = vmatpush1.msra.mxu0 %v87
    %244 = vmatprep.subr.mxu0 0.0
    %245 = vmatpush1.msra.mxu0 %v88
    %246 = vmatprep.subr.mxu0 0.0
    %247 = vmatpush1.msra.mxu0 %v89
    %248 = vmatprep.subr.mxu0 0.0
    %249 = vmatpush1.msra.mxu0 %v90
    %250 = vmatprep.subr.mxu0 0.0
    %251 = vmatpush1.msra.mxu0 %v91
    %252 = vmatprep.subr.mxu0 0.0
    %253 = vmatpush1.msra.mxu0 %v92
    %254 = vmatprep.subr.mxu0 0.0
    %255 = vmatpush1.msra.mxu0 %v93
    %256 = vmatprep.subr.mxu0 0.0
    %257 = vmatpush1.msra.mxu0 %v94
    %258 = vmatprep.subr.mxu0 0.0
    %259 = vmatpush1.msra.mxu0 %v95
    %260 = vmatprep.subr.mxu0 0.0
    %261 = vmatpush1.msra.mxu0 %v96
    %262 = vmatprep.subr.mxu0 0.0
    %263 = vmatpush1.msra.mxu0 %v97
    %264 = vmatprep.subr.mxu0 0.0
    %265 = vmatpush1.msra.mxu0 %v98
    %266 = vmatprep.subr.mxu0 0.0
    %267 = vmatpush1.msra.mxu0 %v99
    %268 = vmatprep.subr.mxu0 0.0
    %269 = vmatpush1.msra.mxu0 %v100
    %270 = vmatprep.subr.mxu0 0.0
    %271 = vmatpush1.msra.mxu0 %v101
    %272 = vmatprep.subr.mxu0 0.0
    %273 = vmatpush1.msra.mxu0 %v102
    %274 = vmatprep.subr.mxu0 0.0
    %275 = vmatpush1.msra.mxu0 %v103
    %276 = vmatprep.subr.mxu0 0.0
    %277 = vmatpush1.msra.mxu0 %v104
    %278 = vmatprep.subr.mxu0 0.0
    %279 = vmatpush1.msra.mxu0 %v105
    %280 = vmatprep.subr.mxu0 0.0
    %281 = vmatpush1.msra.mxu0 %v106
    %282 = vmatprep.subr.mxu0 0.0
    %283 = vmatpush1.msra.mxu0 %v107
    %284 = vmatprep.subr.mxu0 0.0
    %285 = vmatpush1.msra.mxu0 %v108
    %286 = vmatprep.mubr.f32.mxu0 %v147
    %287 = vmatmul.mubr.f32.gmra.mrb[0].mxu0 %v43
    %v288 = vpop.f32.mrb[0].mxu0
    %v289 = vadd.f32 %v219, %v288
    %v290 = vpop.f32.mrb[0].mxu0
    %291 = vdwg.mxu0
    %292 = vmatprep.subr.mxu0 0.0
    %293 = vmatpush1.msra.mxu0 %v109
    %294 = vmatprep.subr.mxu0 0.0
    %295 = vmatpush1.msra.mxu0 %v110
    %296 = vmatprep.subr.mxu0 0.0
    %297 = vmatpush1.msra.mxu0 %v111
    %298 = vmatprep.subr.mxu0 0.0
    %299 = vmatpush1.msra.mxu0 %v112
    %300 = vmatprep.subr.mxu0 0.0
    %301 = vmatpush1.msra.mxu0 %v113
    %302 = vmatprep.subr.mxu0 0.0
    %303 = vmatpush1.msra.mxu0 %v114
    %304 = vmatprep.subr.mxu0 0.0
    %305 = vmatpush1.msra.mxu0 %v115
    %306 = vmatprep.subr.mxu0 0.0
    %307 = vmatpush1.msra.mxu0 %v116
    %308 = vmatprep.subr.mxu0 0.0
    %309 = vmatpush1.msra.mxu0 %v117
    %310 = vmatprep.subr.mxu0 0.0
    %311 = vmatpush1.msra.mxu0 %v118
    %312 = vmatprep.subr.mxu0 0.0
    %313 = vmatpush1.msra.mxu0 %v119
    %314 = vmatprep.subr.mxu0 0.0
    %315 = vmatpush1.msra.mxu0 %v120
    %316 = vmatprep.subr.mxu0 0.0
    %317 = vmatpush1.msra.mxu0 %v121
    %318 = vmatprep.subr.mxu0 0.0
    %319 = vmatpush1.msra.mxu0 %v122
    %320 = vmatprep.subr.mxu0 0.0
    %321 = vmatpush1.msra.mxu0 %v123
    %322 = vmatprep.subr.mxu0 0.0
    %323 = vmatpush1.msra.mxu0 %v124
    %324 = vmatprep.subr.mxu0 0.0
    %325 = vmatpush1.msra.mxu0 %v125
    %326 = vmatprep.subr.mxu0 0.0
    %327 = vmatpush1.msra.mxu0 %v126
    %328 = vmatprep.subr.mxu0 0.0
    %329 = vmatpush1.msra.mxu0 %v127
    %330 = vmatprep.subr.mxu0 0.0
    %331 = vmatpush1.msra.mxu0 %v128
    %332 = vmatprep.subr.mxu0 0.0
    %333 = vmatpush1.msra.mxu0 %v129
    %334 = vmatprep.subr.mxu0 0.0
    %335 = vmatpush1.msra.mxu0 %v130
    %336 = vmatprep.subr.mxu0 0.0
    %337 = vmatpush1.msra.mxu0 %v131
    %338 = vmatprep.subr.mxu0 0.0
    %339 = vmatpush1.msra.mxu0 %v132
    %340 = vmatprep.subr.mxu0 0.0
    %341 = vmatpush1.msra.mxu0 %v133
    %342 = vmatprep.subr.mxu0 0.0
    %343 = vmatpush1.msra.mxu0 %v134
    %344 = vmatprep.subr.mxu0 0.0
    %345 = vmatpush1.msra.mxu0 %v135
    %346 = vmatprep.subr.mxu0 0.0
    %347 = vmatpush1.msra.mxu0 %v136
    %348 = vmatprep.subr.mxu0 0.0
    %349 = vmatpush1.msra.mxu0 %v137
    %350 = vmatprep.subr.mxu0 0.0
    %351 = vmatpush1.msra.mxu0 %v138
    %352 = vmatprep.subr.mxu0 0.0
    %353 = vmatpush1.msra.mxu0 %v139
    %354 = vmatprep.subr.mxu0 0.0
    %355 = vmatpush1.msra.mxu0 %v140
    %356 = vmatprep.mubr.f32.mxu0 %v148
    %357 = vmatmul.mubr.f32.gmra.mrb[0].mxu0 %v44
    %v358 = vpop.f32.mrb[0].mxu0
    %v359 = vadd.f32 %v289, %v358
    %v360 = vpop.f32.mrb[0].mxu0
    %361 = vdwg.mxu0
    %362 = vst [vmem:[#allocation8] sm:$0x7] %v359
    // Predicated region
    $region22: #{tpu_custom_call.1} parent=1 // pred_check
      _
    $region23: #{tpu_custom_call.1} parent=1 // pred_check_branch
      %364 = sbr.rel (0) target = $region25
    $region24: #{tpu_custom_call.1} parent=1 // pred_region
      %s366 = ssub.s32 64, 64
      %367 = vsyncadd [#allocation5], %s366
      %s369 = sshll.u32 [#allocation8], 4
      %s370 = int_to_ptr.vmem [resolvable:$true] %s369
      %372 = dma.vmem_to_hbm [thread:$0]  %s370, 64, %s3, [#allocation5]
    $region25: #{tpu_custom_call.1} parent=1 // pred_fallthru
      _
    // Predicated region
    $region26: #{tpu_custom_call.1} parent=1 // pred_check
      _
    $region27: #{tpu_custom_call.1} parent=1 // pred_check_branch
      %374 = sbr.rel (0) target = $region29
    $region28: #{tpu_custom_call.1} parent=1 // pred_region
      %375 = dma.done [#allocation5], 64
    $region29: #{tpu_custom_call.1} parent=1 // pred_fallthru
      _
    %376 = vsyncpa [#allocation4], 1
    %377 = vsyncpa [#allocation7], 1
    %378 = vsyncpa [#allocation5], 1

</llo_original>
